<compile_context>
chip_gen: v5e
topology: v5e:2x2
jax: 0.10.0
libtpu: 0.0.40
codegen_flags: <defaults>
</compile_context>

<pallas_src>
import jax
import jax.numpy as jnp
from jax.experimental import pallas as pl
from jax.experimental.pallas import tpu as pltpu


# --------------------------------------------------------------------------
# Phase 1: GRU recurrence over time (one grid step per token)
# --------------------------------------------------------------------------
def gru_seq_kernel(ids_ref,                 # SMEM (T,) int32  (scalar prefetch)
                   emb_ref,                 # VMEM (1, 1, Hp) bf16  (one emb row)
                   h0_ref,                  # VMEM (1, Hp) f32
                   w_ref,                   # VMEM (2Hp, 4Hp) bf16  fused [x;h] weights
                   b_rz_ref,                # VMEM (1, 2Hp) f32  (b_ih + b_hh for r,z)
                   b_in_ref, b_hn_ref,      # VMEM (1, Hp) f32
                   hs_ref,                  # VMEM out (T_pad, Hp) f32  (resident)
                   h_scr):                  # VMEM scratch (1, Hp) f32
    t = pl.program_id(0)
    Hp = h_scr.shape[1]

    @pl.when(t == 0)
    def _init():
        hs_ref[...] = jnp.zeros(hs_ref.shape, hs_ref.dtype)
        h_scr[...] = h0_ref[...]

    h_prev = h_scr[...]                                      # (1, Hp) f32

    # relu(embedding(token)) -- only this row was DMA'd in
    x = jnp.maximum(emb_ref[0], 0)                           # (1, Hp) bf16

    # single fused matmul: [relu(x), h] @ [[Wi_rz, Wi_n, 0], [Wh_rz, 0, Wh_n]]
    xh = jnp.concatenate([x, h_prev.astype(x.dtype)], axis=1)          # (1, 2Hp)
    g = jnp.dot(xh, w_ref[...], preferred_element_type=jnp.float32)    # (1, 4Hp)

    rz = jax.nn.sigmoid(g[:, :2 * Hp] + b_rz_ref[...])
    r = rz[:, :Hp]
    z = rz[:, Hp:]
    n = jnp.tanh(g[:, 2 * Hp:3 * Hp] + b_in_ref[...]
                 + r * (g[:, 3 * Hp:] + b_hn_ref[...]))
    h_new = (1.0 - z) * n + z * h_prev

    h_scr[...] = h_new
    hs_ref[pl.ds(t, 1), :] = h_new


# --------------------------------------------------------------------------
# Phase 2: batched output projection + online log-softmax statistics
# --------------------------------------------------------------------------
def vocab_proj_kernel(hs_ref,               # VMEM (Tt, Hp) bf16  (resident per chunk)
                      w_ref,                # VMEM (Hp, TV) bf16  (one vocab tile)
                      b_ref,                # VMEM (1, TV) f32   (pad lanes = -1e30)
                      logits_ref,           # VMEM out (Tt, TV) f32
                      lse_ref,              # VMEM out (Tt, 1) f32
                      m_scr, l_scr):        # VMEM scratch (Tt, 1) f32 each
    v = pl.program_id(1)
    nv = pl.num_programs(1)

    @pl.when(v == 0)
    def _init():
        m_scr[...] = jnp.full(m_scr.shape, -jnp.inf, dtype=jnp.float32)
        l_scr[...] = jnp.zeros(l_scr.shape, dtype=jnp.float32)

    logits = jnp.dot(hs_ref[...], w_ref[...],
                     preferred_element_type=jnp.float32) + b_ref[...]   # (Tt, TV)
    logits_ref[...] = logits

    # online max / sum-exp over the vocabulary tiles
    m_prev = m_scr[...]
    m_new = jnp.maximum(m_prev, jnp.max(logits, axis=1, keepdims=True))
    alpha = jnp.exp(m_prev - m_new)
    l_scr[...] = alpha * l_scr[...] + jnp.sum(jnp.exp(logits - m_new),
                                              axis=1, keepdims=True)
    m_scr[...] = m_new

    @pl.when(v == nv - 1)
    def _finalize():
        lse_ref[...] = m_scr[...] + jnp.log(l_scr[...])


# --------------------------------------------------------------------------
# Host-side parameter preparation (padding / bf16 / bias folding / fusion)
# --------------------------------------------------------------------------
def _round_up(x, m):
    return (x + m - 1) // m * m


def _pad_to(a, shape):
    return jnp.pad(a, [(0, s - d) for d, s in zip(a.shape, shape)])


def prepare_params(params, lane=128, v_tile=1024):
    """Pad to lane-dense shapes, fuse GRU weights, cast weights to bf16."""
    emb, w_ih, w_hh, b_ih, b_hh, w_out, b_out = params
    V, H = emb.shape
    Hp = _round_up(H, lane)
    TV = v_tile if V >= v_tile else _round_up(V, lane)   # large lane-dense tile
    Vp = _round_up(V, TV)

    def pad_gate_cols(w):  # (R, 3H) -> (R, 3Hp), each gate block padded separately
        r, z, n = jnp.split(w, 3, axis=-1)
        return jnp.concatenate([_pad_to(g, (w.shape[0], Hp)) for g in (r, z, n)],
                               axis=-1)

    w_ih_p = _pad_to(pad_gate_cols(w_ih), (Hp, 3 * Hp))          # (Hp, 3Hp) f32
    w_hh_p = _pad_to(pad_gate_cols(w_hh), (Hp, 3 * Hp))
    zeros = jnp.zeros((Hp, Hp), jnp.float32)
    # Fused weight for a single MXU launch per step:
    #   [x, h] @ [[Wi_r, Wi_z, Wi_n, 0   ],
    #             [Wh_r, Wh_z, 0,    Wh_n]]   -> (1, 4Hp) = [rz_sum | n_i | n_h]
    top = jnp.concatenate([w_ih_p[:, :2 * Hp], w_ih_p[:, 2 * Hp:], zeros], axis=1)
    bot = jnp.concatenate([w_hh_p[:, :2 * Hp], zeros, w_hh_p[:, 2 * Hp:]], axis=1)
    w_gru = jnp.concatenate([top, bot], axis=0).astype(jnp.bfloat16)  # (2Hp, 4Hp)

    b_ih_p = pad_gate_cols(b_ih).astype(jnp.float32)              # (1, 3Hp)
    b_hh_p = pad_gate_cols(b_hh).astype(jnp.float32)
    b_rz = (b_ih_p + b_hh_p)[:, :2 * Hp]                          # combined r,z bias
    b_in = b_ih_p[:, 2 * Hp:]
    b_hn = b_hh_p[:, 2 * Hp:]

    emb_p = _pad_to(emb, (V, Hp)).astype(jnp.bfloat16).reshape(V, 1, Hp)
    w_out_p = _pad_to(w_out, (Hp, Vp)).astype(jnp.bfloat16)
    b_out_p = jnp.full((1, Vp), -1e30, jnp.float32).at[:, :V].set(b_out)

    return dict(emb=emb_p, w_gru=w_gru, b_rz=b_rz, b_in=b_in, b_hn=b_hn,
                w_out=w_out_p, b_out=b_out_p,
                H=H, Hp=Hp, V=V, Vp=Vp, TV=TV)


# --------------------------------------------------------------------------
# Wrappers
# --------------------------------------------------------------------------
def decoder_forward_sequence(token_ids, hidden, pp, t_tile=256):
    """Run T decoder steps: phase-1 recurrence + phase-2 batched projection.

    token_ids: (T,) int32, hidden: (1, 1, H) f32.
    Returns (log_probs (T, V), final hidden (1, 1, H)).
    """
    H, Hp, V, Vp, TV = pp["H"], pp["Hp"], pp["V"], pp["Vp"], pp["TV"]
    T = int(token_ids.shape[0])
    NV = Vp // TV

    # T tiling for the projection GEMM (256-row chunks for long sequences).
    if T <= t_tile:
        Tt = _round_up(T, 8)
        T_pad, NT = Tt, 1
    else:
        Tt = t_tile
        T_pad = _round_up(T, Tt)
        NT = T_pad // Tt

    ids = token_ids.astype(jnp.int32).reshape(T)
    h0 = jnp.zeros((1, Hp), jnp.float32).at[:, :H].set(
        hidden.reshape(1, H).astype(jnp.float32))

    const2 = lambda t, ids_ref: (0, 0)

    # ---------------- Phase 1: GRU recurrence -----------------------------
    est1 = (2 * (2 * Hp) * (4 * Hp) * 2        # resident fused GRU weights (bf16 x2 buf)
            + 2 * 2 * Hp                        # embedding row (double-buffered)
            + 2 * T_pad * Hp * 4                # resident hidden-state output
            + 16 * Hp * 4)                      # biases + h0 + scratch
    vmem1 = int(min(max(2 * est1, 32 * 2**20), 56 * 2**20))

    hs = pl.pallas_call(
        gru_seq_kernel,
        out_shape=jax.ShapeDtypeStruct((T_pad, Hp), jnp.float32),
        grid_spec=pltpu.PrefetchScalarGridSpec(
            num_scalar_prefetch=1,
            grid=(T,),
            in_specs=[
                pl.BlockSpec((1, 1, Hp), lambda t, ids_ref: (ids_ref[t], 0, 0)),
                pl.BlockSpec((1, Hp), const2),                 # h0
                pl.BlockSpec((2 * Hp, 4 * Hp), const2),        # fused GRU weights
                pl.BlockSpec((1, 2 * Hp), const2),             # b_rz
                pl.BlockSpec((1, Hp), const2),                 # b_in
                pl.BlockSpec((1, Hp), const2),                 # b_hn
            ],
            out_specs=pl.BlockSpec((T_pad, Hp), const2),       # resident hidden states
            scratch_shapes=[pltpu.VMEM((1, Hp), jnp.float32)],
        ),
        compiler_params=pltpu.CompilerParams(
            dimension_semantics=("arbitrary",),
            vmem_limit_bytes=vmem1,
        ),
    )(ids, pp["emb"], h0, pp["w_gru"], pp["b_rz"], pp["b_in"], pp["b_hn"])

    # ---------------- Phase 2: batched vocab projection --------------------
    hs_bf = hs.astype(jnp.bfloat16)

    est2 = (2 * Tt * Hp * 2                     # hs chunk (bf16, double-buffered)
            + 2 * Hp * TV * 2 + 2 * TV * 4      # w_out / b_out tiles
            + 2 * Tt * TV * 4                   # logits output tile
            + 8 * Tt * 4)                       # lse + scratch
    vmem2 = int(min(max(2 * est2, 32 * 2**20), 56 * 2**20))

    logits, lse = pl.pallas_call(
        vocab_proj_kernel,
        out_shape=(jax.ShapeDtypeStruct((T_pad, Vp), jnp.float32),
                   jax.ShapeDtypeStruct((T_pad, 1), jnp.float32)),
        grid_spec=pltpu.PrefetchScalarGridSpec(
            num_scalar_prefetch=0,
            grid=(NT, NV),
            in_specs=[
                pl.BlockSpec((Tt, Hp), lambda ti, v: (ti, 0)),   # hidden-state chunk
                pl.BlockSpec((Hp, TV), lambda ti, v: (0, v)),    # w_out tile
                pl.BlockSpec((1, TV), lambda ti, v: (0, v)),     # b_out tile
            ],
            out_specs=(
                pl.BlockSpec((Tt, TV), lambda ti, v: (ti, v)),   # logits
                pl.BlockSpec((Tt, 1), lambda ti, v: (ti, 0)),    # log-sum-exp
            ),
            scratch_shapes=[pltpu.VMEM((Tt, 1), jnp.float32),
                            pltpu.VMEM((Tt, 1), jnp.float32)],
        ),
        compiler_params=pltpu.CompilerParams(
            dimension_semantics=("parallel", "arbitrary"),
            vmem_limit_bytes=vmem2,
        ),
    )(hs_bf, pp["w_out"], pp["b_out"])

    # trivial XLA epilogue: normalize and strip padding
    logp = logits[:T, :V] - lse[:T]
    h_new = hs[T - 1:T, :H].reshape(1, 1, H)
    return logp, h_new


def decoder_forward(token_id, hidden, pp):
    """Single-step forward, matching the PyTorch module's forward(input, hidden)."""
    ids = jnp.asarray(token_id, jnp.int32).reshape(1)
    logp, h_new = decoder_forward_sequence(ids, hidden, pp)
    return logp, h_new                                  # (1, V), (1, 1, H)


# --------------------------------------------------------------------------
# Deterministic synthetic parameters (PyTorch-like init, transposed layouts)
# --------------------------------------------------------------------------
def init_params(key, hidden_size, output_size):
    ks = jax.random.split(key, 7)
    bound = 1.0 / jnp.sqrt(hidden_size)
    u = lambda k, shape: jax.random.uniform(k, shape, jnp.float32, -bound, bound)

    emb = jax.random.normal(ks[0], (output_size, hidden_size), jnp.float32)
    # GRU weights stored transposed: (H, 3H), gate order [r, z, n].
    w_ih = u(ks[1], (hidden_size, 3 * hidden_size))
    w_hh = u(ks[2], (hidden_size, 3 * hidden_size))
    b_ih = u(ks[3], (1, 3 * hidden_size))
    b_hh = u(ks[4], (1, 3 * hidden_size))
    # Linear stored transposed: (H, V).
    w_out = u(ks[5], (hidden_size, output_size))
    b_out = u(ks[6], (1, output_size))
    return emb, w_ih, w_hh, b_ih, b_hh, w_out, b_out


# --------------------------------------------------------------------------
# Pure-JAX reference (same bf16 rounding points as the kernel)
# --------------------------------------------------------------------------
def decoder_reference_sequence(token_ids, hidden, params):
    emb, w_ih, w_hh, b_ih, b_hh, w_out, b_out = params
    H = w_ih.shape[0]
    bf = jnp.bfloat16
    emb_b, w_ih_b, w_hh_b, w_out_b = (a.astype(bf) for a in (emb, w_ih, w_hh, w_out))

    h = hidden.reshape(1, H).astype(jnp.float32)
    logps = []
    for t in range(int(token_ids.shape[0])):
        x = jnp.maximum(emb_b[token_ids[t]], 0)[None, :]
        gi = jnp.dot(x, w_ih_b, preferred_element_type=jnp.float32) + b_ih
        gh = jnp.dot(h.astype(bf), w_hh_b, preferred_element_type=jnp.float32) + b_hh
        r = jax.nn.sigmoid(gi[:, :H] + gh[:, :H])
        z = jax.nn.sigmoid(gi[:, H:2 * H] + gh[:, H:2 * H])
        n = jnp.tanh(gi[:, 2 * H:] + r * gh[:, 2 * H:])
        h = (1.0 - z) * n + z * h
        logits = jnp.dot(h.astype(bf), w_out_b,
                         preferred_element_type=jnp.float32) + b_out
        logps.append(logits - jax.scipy.special.logsumexp(logits, axis=1,
                                                          keepdims=True))
    return jnp.concatenate(logps, axis=0), h.reshape(1, 1, H)


# --------------------------------------------------------------------------
if __name__ == "__main__":
    hidden_size = 32
    output_size = 40
    seq_len = 8

    key = jax.random.PRNGKey(0)
    k_params, k_hid, k_tok = jax.random.split(key, 3)

    params = init_params(k_params, hidden_size, output_size)
    prepared = prepare_params(params)

    hidden = jax.random.normal(k_hid, (1, 1, hidden_size), jnp.float32)
    token_ids = jax.random.randint(k_tok, (seq_len,), 0, output_size,
                                   dtype=jnp.int32)

    # --- single step: exactly the module's forward(input, hidden) ----------
    logp1, h1 = decoder_forward(token_ids[:1], hidden, prepared)
    logp1 = jax.block_until_ready(logp1)
    h1 = jax.block_until_ready(h1)
    ref_logp1, ref_h1 = decoder_reference_sequence(token_ids[:1], hidden, params)
    assert logp1.shape == (1, output_size) and h1.shape == (1, 1, hidden_size)
    assert jnp.allclose(logp1, ref_logp1, atol=1e-2, rtol=1e-2)
    assert jnp.allclose(h1, ref_h1, atol=1e-2, rtol=1e-2)

    # --- fused T-step decode (recurrence kernel + batched projection) ------
    logp_seq, h_seq = decoder_forward_sequence(token_ids, hidden, prepared)
    logp_seq = jax.block_until_ready(logp_seq)
    h_seq = jax.block_until_ready(h_seq)
    ref_logp_seq, ref_h_seq = decoder_reference_sequence(token_ids, hidden, params)
    assert logp_seq.shape == (seq_len, output_size)
    assert jnp.allclose(logp_seq, ref_logp_seq, atol=1e-2, rtol=1e-2)
    assert jnp.allclose(h_seq, ref_h_seq, atol=1e-2, rtol=1e-2)

    print("KERNEL_OK")
</pallas_src>

<mosaic_0001>
module attributes {stable_mosaic.version = 11 : i64} {
  func.func @gru_seq_kernel(%arg0: i32, %arg1: memref<1xi32, #tpu.memory_space<smem>>, %arg2: memref<1x1x128xbf16, #tpu.memory_space<vmem>>, %arg3: memref<1x128xf32, #tpu.memory_space<vmem>>, %arg4: memref<256x512xbf16, #tpu.memory_space<vmem>>, %arg5: memref<1x256xf32, #tpu.memory_space<vmem>>, %arg6: memref<1x128xf32, #tpu.memory_space<vmem>>, %arg7: memref<1x128xf32, #tpu.memory_space<vmem>>, %arg8: memref<8x128xf32, #tpu.memory_space<vmem>>, %arg9: memref<1x128xf32, #tpu.memory_space<vmem>>) attributes {dimension_semantics = [#tpu.dimension_semantics<arbitrary>], iteration_bounds = array<i64: 1>, scalar_prefetch = 1 : i64, scratch_operands = 1 : i64, tpu.core_type = #tpu.core_type<tc>, window_params = [{transform_indices = @transform_0, window_bounds = array<i64: 1, 1, 128>}, {pipeline_mode = #tpu.pipeline_mode<synchronous>, transform_indices = @transform_1, window_bounds = array<i64: 1, 128>}, {pipeline_mode = #tpu.pipeline_mode<synchronous>, transform_indices = @transform_2, window_bounds = array<i64: 256, 512>}, {pipeline_mode = #tpu.pipeline_mode<synchronous>, transform_indices = @transform_3, window_bounds = array<i64: 1, 256>}, {pipeline_mode = #tpu.pipeline_mode<synchronous>, transform_indices = @transform_4, window_bounds = array<i64: 1, 128>}, {pipeline_mode = #tpu.pipeline_mode<synchronous>, transform_indices = @transform_5, window_bounds = array<i64: 1, 128>}, {pipeline_mode = #tpu.pipeline_mode<synchronous>, transform_indices = @transform_6, window_bounds = array<i64: 8, 128>}]} {
    %c0_i32 = arith.constant 0 : i32
    %0 = arith.cmpi eq, %arg0, %c0_i32 : i32
    %1 = arith.extui %0 : i1 to i32
    %c0_i32_0 = arith.constant 0 : i32
    %2 = arith.cmpi ne, %1, %c0_i32_0 : i32
    scf.if %2 {
      %cst_19 = arith.constant 0.000000e+00 : f32
      %39 = vector.broadcast %cst_19 : f32 to vector<8x128xf32>
      %c0_20 = arith.constant 0 : index
      %c0_21 = arith.constant 0 : index
      %40 = vector.load %arg8[%c0_20, %c0_21] : memref<8x128xf32, #tpu.memory_space<vmem>>, vector<8x128xf32>
      tpu.vector_store %arg8[%c0_20, %c0_21], %39 {strides = array<i32>} : memref<8x128xf32, #tpu.memory_space<vmem>>, vector<8x128xf32>,
      %c0_22 = arith.constant 0 : index
      %c0_23 = arith.constant 0 : index
      %41 = vector.load %arg3[%c0_22, %c0_23] : memref<1x128xf32, #tpu.memory_space<vmem>>, vector<1x128xf32>
      %c0_24 = arith.constant 0 : index
      %c0_25 = arith.constant 0 : index
      %42 = vector.load %arg9[%c0_24, %c0_25] : memref<1x128xf32, #tpu.memory_space<vmem>>, vector<1x128xf32>
      tpu.vector_store %arg9[%c0_24, %c0_25], %41 {strides = array<i32>} : memref<1x128xf32, #tpu.memory_space<vmem>>, vector<1x128xf32>,
    } else {
    }
    %c0 = arith.constant 0 : index
    %c0_1 = arith.constant 0 : index
    %3 = vector.load %arg9[%c0, %c0_1] : memref<1x128xf32, #tpu.memory_space<vmem>>, vector<1x128xf32>
    %c0_2 = arith.constant 0 : index
    %c0_3 = arith.constant 0 : index
    %c0_4 = arith.constant 0 : index
    %4 = vector.load %arg2[%c0_2, %c0_3, %c0_4] : memref<1x1x128xbf16, #tpu.memory_space<vmem>>, vector<1x1x128xbf16>
    %5 = vector.shape_cast %4 : vector<1x1x128xbf16> to vector<1x128xbf16>
    %cst = arith.constant 0.000000e+00 : bf16
    %6 = vector.broadcast %cst : bf16 to vector<1x128xbf16>
    %7 = arith.maximumf %5, %6 : vector<1x128xbf16>
    %8 = arith.truncf %3 : vector<1x128xf32> to vector<1x128xbf16>
    %9 = tpu.concatenate %7, %8 in 1 : vector<1x128xbf16>, vector<1x128xbf16> -> vector<1x256xbf16>
    %c0_5 = arith.constant 0 : index
    %c0_6 = arith.constant 0 : index
    %10 = vector.load %arg4[%c0_5, %c0_6] : memref<256x512xbf16, #tpu.memory_space<vmem>>, vector<256x512xbf16>
    %cst_7 = arith.constant dense<0.000000e+00> : vector<1x512xf32>
    %11 = tpu.matmul %9, %10, %cst_7 {dimension_numbers = #tpu.dot_dimension_numbers<[1], [0], [0], [1], [0, 0, 1, 1], [], []>} : vector<1x256xbf16>, vector<256x512xbf16>, vector<1x512xf32> -> vector<1x512xf32>
    %12 = vector.extract_strided_slice %11 {offsets = [0, 0], sizes = [1, 256], strides = [1, 1]} : vector<1x512xf32> to vector<1x256xf32>
    %c0_8 = arith.constant 0 : index
    %c0_9 = arith.constant 0 : index
    %13 = vector.load %arg5[%c0_8, %c0_9] : memref<1x256xf32, #tpu.memory_space<vmem>>, vector<1x256xf32>
    %14 = arith.addf %12, %13 : vector<1x256xf32>
    %15 = arith.negf %14 : vector<1x256xf32>
    %16 = math.exp %15 : vector<1x256xf32>
    %cst_10 = arith.constant 1.000000e+00 : f32
    %17 = vector.broadcast %cst_10 : f32 to vector<1x256xf32>
    %18 = arith.addf %17, %16 : vector<1x256xf32>
    %19 = arith.divf %17, %18 : vector<1x256xf32>
    %20 = vector.extract_strided_slice %19 {offsets = [0, 0], sizes = [1, 128], strides = [1, 1]} : vector<1x256xf32> to vector<1x128xf32>
    %21 = vector.extract_strided_slice %19 {offsets = [0, 128], sizes = [1, 128], strides = [1, 1]} : vector<1x256xf32> to vector<1x128xf32>
    %22 = vector.extract_strided_slice %11 {offsets = [0, 256], sizes = [1, 128], strides = [1, 1]} : vector<1x512xf32> to vector<1x128xf32>
    %c0_11 = arith.constant 0 : index
    %c0_12 = arith.constant 0 : index
    %23 = vector.load %arg6[%c0_11, %c0_12] : memref<1x128xf32, #tpu.memory_space<vmem>>, vector<1x128xf32>
    %24 = arith.addf %22, %23 : vector<1x128xf32>
    %25 = vector.extract_strided_slice %11 {offsets = [0, 384], sizes = [1, 128], strides = [1, 1]} : vector<1x512xf32> to vector<1x128xf32>
    %c0_13 = arith.constant 0 : index
    %c0_14 = arith.constant 0 : index
    %26 = vector.load %arg7[%c0_13, %c0_14] : memref<1x128xf32, #tpu.memory_space<vmem>>, vector<1x128xf32>
    %27 = arith.addf %25, %26 : vector<1x128xf32>
    %28 = arith.mulf %20, %27 : vector<1x128xf32>
    %29 = arith.addf %24, %28 : vector<1x128xf32>
    %30 = math.tanh %29 : vector<1x128xf32>
    %cst_15 = arith.constant 1.000000e+00 : f32
    %31 = vector.broadcast %cst_15 : f32 to vector<1x128xf32>
    %32 = arith.subf %31, %21 : vector<1x128xf32>
    %33 = arith.mulf %32, %30 : vector<1x128xf32>
    %34 = arith.mulf %21, %3 : vector<1x128xf32>
    %35 = arith.addf %33, %34 : vector<1x128xf32>
    %c0_16 = arith.constant 0 : index
    %c0_17 = arith.constant 0 : index
    %36 = vector.load %arg9[%c0_16, %c0_17] : memref<1x128xf32, #tpu.memory_space<vmem>>, vector<1x128xf32>
    tpu.vector_store %arg9[%c0_16, %c0_17], %35 {strides = array<i32>} : memref<1x128xf32, #tpu.memory_space<vmem>>, vector<1x128xf32>,
    %37 = arith.index_cast %arg0 : i32 to index
    %c0_18 = arith.constant 0 : index
    %38 = vector.load %arg8[%37, %c0_18] : memref<8x128xf32, #tpu.memory_space<vmem>>, vector<1x128xf32>
    tpu.vector_store %arg8[%37, %c0_18], %35 {strides = array<i32>} : memref<8x128xf32, #tpu.memory_space<vmem>>, vector<1x128xf32>,
    return
  }
  func.func @transform_0(%arg0: i32, %arg1: memref<1xi32, #tpu.memory_space<smem>>) -> (i32, i32, i32) {
    %0 = arith.index_cast %arg0 : i32 to index
    %1 = memref.load %arg1[%0] : memref<1xi32, #tpu.memory_space<smem>>
    %c0_i32 = arith.constant 0 : i32
    %c0_i32_0 = arith.constant 0 : i32
    %c0_i32_1 = arith.constant 0 : i32
    return %1, %c0_i32, %c0_i32_0 : i32, i32, i32
  }
  func.func @transform_1(%arg0: i32, %arg1: memref<1xi32, #tpu.memory_space<smem>>) -> (i32, i32) {
    %c0_i32 = arith.constant 0 : i32
    %c0_i32_0 = arith.constant 0 : i32
    %c0_i32_1 = arith.constant 0 : i32
    return %c0_i32, %c0_i32_0 : i32, i32
  }
  func.func @transform_2(%arg0: i32, %arg1: memref<1xi32, #tpu.memory_space<smem>>) -> (i32, i32) {
    %c0_i32 = arith.constant 0 : i32
    %c0_i32_0 = arith.constant 0 : i32
    %c0_i32_1 = arith.constant 0 : i32
    return %c0_i32, %c0_i32_0 : i32, i32
  }
  func.func @transform_3(%arg0: i32, %arg1: memref<1xi32, #tpu.memory_space<smem>>) -> (i32, i32) {
    %c0_i32 = arith.constant 0 : i32
    %c0_i32_0 = arith.constant 0 : i32
    %c0_i32_1 = arith.constant 0 : i32
    return %c0_i32, %c0_i32_0 : i32, i32
  }
  func.func @transform_4(%arg0: i32, %arg1: memref<1xi32, #tpu.memory_space<smem>>) -> (i32, i32) {
    %c0_i32 = arith.constant 0 : i32
    %c0_i32_0 = arith.constant 0 : i32
    %c0_i32_1 = arith.constant 0 : i32
    return %c0_i32, %c0_i32_0 : i32, i32
  }
  func.func @transform_5(%arg0: i32, %arg1: memref<1xi32, #tpu.memory_space<smem>>) -> (i32, i32) {
    %c0_i32 = arith.constant 0 : i32
    %c0_i32_0 = arith.constant 0 : i32
    %c0_i32_1 = arith.constant 0 : i32
    return %c0_i32, %c0_i32_0 : i32, i32
  }
  func.func @transform_6(%arg0: i32, %arg1: memref<1xi32, #tpu.memory_space<smem>>) -> (i32, i32) {
    %c0_i32 = arith.constant 0 : i32
    %c0_i32_0 = arith.constant 0 : i32
    %c0_i32_1 = arith.constant 0 : i32
    return %c0_i32, %c0_i32_0 : i32, i32
  }
}

</mosaic_0001>

<llo_original>
// kernel: tpu_custom_call.1
$region0: #{tpu_custom_call.1}
  #allocation0 [shape = 'u32[]', space=smem, size = 0x4, offset = 0x4, fixed_abs, tag = 'smem constant byte address 0x4 - core index']
  #allocation1 [shape = 'u32[72,128]{1,0:T(1,128)}', space=vmem, size = 0x9000, scoped, tag = 'internal scratch']
  #allocation2 [shape = 'f32[1,128]{1,0:T(1,128)}', space=vmem, size = 0x200, scoped, tag = 'scratch operand']
  #allocation3 [shape = 's32[1]{0}', space=sflag, size = 0x4, scoped, tag = 'scoped memory for tpu_custom_call.1']
  #allocation4 [shape = 's32[1]{0:T(128)S(6)}', space=smem, size = 0x200, scoped, tag = 'prefetched SMEM operand 0']
  %s0 = inlined_call_operand.<no memory space> [shape: s32[1], index: 0, kind: input, shape index: {}]
  %s1 = inlined_call_operand.vmem [shape: bf16[40,1,128], index: 1, kind: input, shape index: {}]
  %s2 = inlined_call_operand.vmem [shape: f32[1,128], index: 2, kind: input, shape index: {}]
  %s3 = inlined_call_operand.hbm [shape: bf16[256,512], index: 3, kind: input, shape index: {}]
  %s4 = inlined_call_operand.vmem [shape: f32[1,256], index: 4, kind: input, shape index: {}]
  %s5 = inlined_call_operand.vmem [shape: f32[1,128], index: 5, kind: input, shape index: {}]
  %s6 = inlined_call_operand.vmem [shape: f32[1,128], index: 6, kind: input, shape index: {}]
  %s7 = inlined_call_operand.hbm [shape: f32[8,128], index: 7, kind: output, shape index: {}]
  %s8 = sld [smem:[#allocation0]]
  $region42: #{tpu_custom_call.1} parent=0
    _
  %s10 = ssub.s32 1, %s8
  %s11 = scalar_select 0, %s10, %s8
  %12 = sst [smem:[#allocation4]] %s0
  $region1: #{tpu_custom_call.1} parent=0
    #allocation5 [shape = 'u8[262144]{0}', space=vmem, size = 0x40000, scoped, tag = 'input window, operand 3, single buffered']
    #allocation6 [shape = 's32[1]{0}', space=sflag, size = 0x4, scoped, tag = 'scoped memory for tpu_custom_call.1']
    #allocation7 [shape = 's32[1]{0}', space=sflag, size = 0x4, scoped, tag = 'scoped memory for tpu_custom_call.1']
    #allocation8 [shape = 'u8[4096]{0}', space=vmem, size = 0x1000, scoped, tag = 'output window, operand 0, single buffered']
    %13 = vsyncpa [#allocation6], 0
    %14 = vsyncpa [#allocation7], 0
    // Predicated region
    $region2: #{tpu_custom_call.1} parent=1 // pred_check
      _
    $region3: #{tpu_custom_call.1} parent=1 // pred_check_branch
      %16 = sbr.rel (0) target = $region5
    $region4: #{tpu_custom_call.1} parent=1 // pred_region
      %s17 = sld [smem:[#allocation4]]
      %p18 = scmp.lt.s32.totalorder %s17, 39
      %s19 = scalar_select %p18, %s17, 39
      %s20 = scalar_lea.vmem %s1, %s19
      %s21 = sld [smem:[#allocation4]]
    $region5: #{tpu_custom_call.1} parent=1 // pred_fallthru
      _
    // Predicated region
    $region6: #{tpu_custom_call.1} parent=1 // pred_check
      _
    $region7: #{tpu_custom_call.1} parent=1 // pred_check_branch
      %23 = sbr.rel (0) target = $region9
    $region8: #{tpu_custom_call.1} parent=1 // pred_region
      _
    $region9: #{tpu_custom_call.1} parent=1 // pred_fallthru
      _
    // Predicated region
    $region10: #{tpu_custom_call.1} parent=1 // pred_check
      _
    $region11: #{tpu_custom_call.1} parent=1 // pred_check_branch
      %25 = sbr.rel (0) target = $region13
    $region12: #{tpu_custom_call.1} parent=1 // pred_region
      %27 = vsyncadd [#allocation6], 0
      %s28 = sshll.u32 %s3, 4
      %s29 = int_to_ptr.hbm [resolvable:$true] %s28
      %s30 = sshll.u32 [#allocation5], 4
      %s31 = int_to_ptr.vmem [resolvable:$true] %s30
      %36 = dma.hbm_to_vmem [thread:$0]  %s29, 8192, %s31, [#allocation6], 256, 256, 16
    $region13: #{tpu_custom_call.1} parent=1 // pred_fallthru
      _
    // Predicated region
    $region14: #{tpu_custom_call.1} parent=1 // pred_check
      _
    $region15: #{tpu_custom_call.1} parent=1 // pred_check_branch
      %38 = sbr.rel (0) target = $region17
    $region16: #{tpu_custom_call.1} parent=1 // pred_region
      _
    $region17: #{tpu_custom_call.1} parent=1 // pred_fallthru
      _
    // Predicated region
    $region18: #{tpu_custom_call.1} parent=1 // pred_check
      _
    $region19: #{tpu_custom_call.1} parent=1 // pred_check_branch
      %40 = sbr.rel (0) target = $region21
    $region20: #{tpu_custom_call.1} parent=1 // pred_region
      _
    $region21: #{tpu_custom_call.1} parent=1 // pred_fallthru
      _
    // Predicated region
    $region22: #{tpu_custom_call.1} parent=1 // pred_check
      _
    $region23: #{tpu_custom_call.1} parent=1 // pred_check_branch
      %42 = sbr.rel (0) target = $region25
    $region24: #{tpu_custom_call.1} parent=1 // pred_region
      _
    $region25: #{tpu_custom_call.1} parent=1 // pred_fallthru
      _
    // Predicated region
    $region26: #{tpu_custom_call.1} parent=1 // pred_check
      _
    $region27: #{tpu_custom_call.1} parent=1 // pred_check_branch
      %44 = sbr.rel (0) target = $region29
    $region28: #{tpu_custom_call.1} parent=1 // pred_region
      %46 = dma.done [#allocation6], 8192
    $region29: #{tpu_custom_call.1} parent=1 // pred_fallthru
      _
    %s47 = sld [smem:[#allocation4]]
    %p48 = scmp.lt.s32.totalorder %s47, 39
    %s49 = scalar_select %p48, %s47, 39
    %s50 = scalar_lea.vmem %s1, %s49
    %s51 = sld [smem:[#allocation4]]
    %p52 = scmp.lt.s32.totalorder %s51, 39
    %s53 = scalar_select %p52, %s51, 39
    %s54 = scalar_lea.vmem %s1, %s53
    %s55 = sld [smem:[#allocation4]]
    %p56 = scmp.eq.s32.totalorder 0, 0
    // Predicated region
    $region30: #{tpu_custom_call.1} parent=1 // pred_check
      %p57 = pneg %p56
    $region31: #{tpu_custom_call.1} parent=1 // pred_check_branch
      %59 = sbr.rel (%p57) target = $region33
    $region32: #{tpu_custom_call.1} parent=1 // pred_region
      %60 = vst [vmem:[#allocation8] sm:$0xff] 0.0
      %v61 = vld [vmem:[%s2] sm:$0x1]
      %62 = vst [vmem:[#allocation2] sm:$0x1] %v61
    $region33: #{tpu_custom_call.1} parent=1 // pred_fallthru
      _
    %v63 = vld [vmem:[#allocation2] sm:$0x1]
    %v64 = vld [vmem:[%s54] sm:$0x1]
    %v65 = vunpack.c.l.bf16 %v64
    %v66 = vmax.f32 %v65, 0.0
    %v67 = vpack.c.bf16 %v66, %v66
    %v68 = vpack.c.bf16 %v63, %v63
    %v69 = vld [vmem:[#allocation5] sm:$0xff]
    %v70 = vld [vmem:[#allocation5 + $0x8] sm:$0xff]
    %v71 = vld [vmem:[#allocation5 + $0x10] sm:$0xff]
    %v72 = vld [vmem:[#allocation5 + $0x18] sm:$0xff]
    %v73 = vld [vmem:[#allocation5 + $0x20] sm:$0xff]
    %v74 = vld [vmem:[#allocation5 + $0x28] sm:$0xff]
    %v75 = vld [vmem:[#allocation5 + $0x30] sm:$0xff]
    %v76 = vld [vmem:[#allocation5 + $0x38] sm:$0xff]
    %v77 = vld [vmem:[#allocation5 + $0x40] sm:$0xff]
    %v78 = vld [vmem:[#allocation5 + $0x48] sm:$0xff]
    %v79 = vld [vmem:[#allocation5 + $0x50] sm:$0xff]
    %v80 = vld [vmem:[#allocation5 + $0x58] sm:$0xff]
    %v81 = vld [vmem:[#allocation5 + $0x60] sm:$0xff]
    %v82 = vld [vmem:[#allocation5 + $0x68] sm:$0xff]
    %v83 = vld [vmem:[#allocation5 + $0x70] sm:$0xff]
    %v84 = vld [vmem:[#allocation5 + $0x78] sm:$0xff]
    %v85 = vld [vmem:[#allocation5 + $0x80] sm:$0xff]
    %v86 = vld [vmem:[#allocation5 + $0x88] sm:$0xff]
    %v87 = vld [vmem:[#allocation5 + $0x90] sm:$0xff]
    %v88 = vld [vmem:[#allocation5 + $0x98] sm:$0xff]
    %v89 = vld [vmem:[#allocation5 + $0xa0] sm:$0xff]
    %v90 = vld [vmem:[#allocation5 + $0xa8] sm:$0xff]
    %v91 = vld [vmem:[#allocation5 + $0xb0] sm:$0xff]
    %v92 = vld [vmem:[#allocation5 + $0xb8] sm:$0xff]
    %v93 = vld [vmem:[#allocation5 + $0xc0] sm:$0xff]
    %v94 = vld [vmem:[#allocation5 + $0xc8] sm:$0xff]
    %v95 = vld [vmem:[#allocation5 + $0xd0] sm:$0xff]
    %v96 = vld [vmem:[#allocation5 + $0xd8] sm:$0xff]
    %v97 = vld [vmem:[#allocation5 + $0xe0] sm:$0xff]
    %v98 = vld [vmem:[#allocation5 + $0xe8] sm:$0xff]
    %v99 = vld [vmem:[#allocation5 + $0xf0] sm:$0xff]
    %v100 = vld [vmem:[#allocation5 + $0xf8] sm:$0xff]
    %v101 = vld [vmem:[#allocation5 + $0x100] sm:$0xff]
    %v102 = vld [vmem:[#allocation5 + $0x108] sm:$0xff]
    %v103 = vld [vmem:[#allocation5 + $0x110] sm:$0xff]
    %v104 = vld [vmem:[#allocation5 + $0x118] sm:$0xff]
    %v105 = vld [vmem:[#allocation5 + $0x120] sm:$0xff]
    %v106 = vld [vmem:[#allocation5 + $0x128] sm:$0xff]
    %v107 = vld [vmem:[#allocation5 + $0x130] sm:$0xff]
    %v108 = vld [vmem:[#allocation5 + $0x138] sm:$0xff]
    %v109 = vld [vmem:[#allocation5 + $0x140] sm:$0xff]
    %v110 = vld [vmem:[#allocation5 + $0x148] sm:$0xff]
    %v111 = vld [vmem:[#allocation5 + $0x150] sm:$0xff]
    %v112 = vld [vmem:[#allocation5 + $0x158] sm:$0xff]
    %v113 = vld [vmem:[#allocation5 + $0x160] sm:$0xff]
    %v114 = vld [vmem:[#allocation5 + $0x168] sm:$0xff]
    %v115 = vld [vmem:[#allocation5 + $0x170] sm:$0xff]
    %v116 = vld [vmem:[#allocation5 + $0x178] sm:$0xff]
    %v117 = vld [vmem:[#allocation5 + $0x180] sm:$0xff]
    %v118 = vld [vmem:[#allocation5 + $0x188] sm:$0xff]
    %v119 = vld [vmem:[#allocation5 + $0x190] sm:$0xff]
    %v120 = vld [vmem:[#allocation5 + $0x198] sm:$0xff]
    %v121 = vld [vmem:[#allocation5 + $0x1a0] sm:$0xff]
    %v122 = vld [vmem:[#allocation5 + $0x1a8] sm:$0xff]
    %v123 = vld [vmem:[#allocation5 + $0x1b0] sm:$0xff]
    %v124 = vld [vmem:[#allocation5 + $0x1b8] sm:$0xff]
    %v125 = vld [vmem:[#allocation5 + $0x1c0] sm:$0xff]
    %v126 = vld [vmem:[#allocation5 + $0x1c8] sm:$0xff]
    %v127 = vld [vmem:[#allocation5 + $0x1d0] sm:$0xff]
    %v128 = vld [vmem:[#allocation5 + $0x1d8] sm:$0xff]
    %v129 = vld [vmem:[#allocation5 + $0x1e0] sm:$0xff]
    %v130 = vld [vmem:[#allocation5 + $0x1e8] sm:$0xff]
    %v131 = vld [vmem:[#allocation5 + $0x1f0] sm:$0xff]
    %v132 = vld [vmem:[#allocation5 + $0x1f8] sm:$0xff]
    %v197 = vunpack.c.l.b16 %v69
    %v198 = vunpack.c.h.b16 %v69
    %v199 = vunpack.c.l.b16 %v70
    %v200 = vunpack.c.h.b16 %v70
    %v201 = vunpack.c.l.b16 %v71
    %v202 = vunpack.c.h.b16 %v71
    %v203 = vunpack.c.l.b16 %v72
    %v204 = vunpack.c.h.b16 %v72
    %v205 = vunpack.c.l.b16 %v73
    %v206 = vunpack.c.h.b16 %v73
    %v207 = vunpack.c.l.b16 %v74
    %v208 = vunpack.c.h.b16 %v74
    %v209 = vunpack.c.l.b16 %v75
    %v210 = vunpack.c.h.b16 %v75
    %v211 = vunpack.c.l.b16 %v76
    %v212 = vunpack.c.h.b16 %v76
    %v213 = vunpack.c.l.b16 %v77
    %v214 = vunpack.c.h.b16 %v77
    %v215 = vunpack.c.l.b16 %v78
    %v216 = vunpack.c.h.b16 %v78
    %v217 = vunpack.c.l.b16 %v79
    %v218 = vunpack.c.h.b16 %v79
    %v219 = vunpack.c.l.b16 %v80
    %v220 = vunpack.c.h.b16 %v80
    %v221 = vunpack.c.l.b16 %v81
    %v222 = vunpack.c.h.b16 %v81
    %v223 = vunpack.c.l.b16 %v82
    %v224 = vunpack.c.h.b16 %v82
    %v225 = vunpack.c.l.b16 %v83
    %v226 = vunpack.c.h.b16 %v83
    %v227 = vunpack.c.l.b16 %v84
    %v228 = vunpack.c.h.b16 %v84
    %v229 = vunpack.c.l.b16 %v85
    %v230 = vunpack.c.h.b16 %v85
    %v231 = vunpack.c.l.b16 %v86
    %v232 = vunpack.c.h.b16 %v86
    %v233 = vunpack.c.l.b16 %v87
    %v234 = vunpack.c.h.b16 %v87
    %v235 = vunpack.c.l.b16 %v88
    %v236 = vunpack.c.h.b16 %v88
    %v237 = vunpack.c.l.b16 %v89
    %v238 = vunpack.c.h.b16 %v89
    %v239 = vunpack.c.l.b16 %v90
    %v240 = vunpack.c.h.b16 %v90
    %v241 = vunpack.c.l.b16 %v91
    %v242 = vunpack.c.h.b16 %v91
    %v243 = vunpack.c.l.b16 %v92
    %v244 = vunpack.c.h.b16 %v92
    %v245 = vunpack.c.l.b16 %v93
    %v246 = vunpack.c.h.b16 %v93
    %v247 = vunpack.c.l.b16 %v94
    %v248 = vunpack.c.h.b16 %v94
    %v249 = vunpack.c.l.b16 %v95
    %v250 = vunpack.c.h.b16 %v95
    %v251 = vunpack.c.l.b16 %v96
    %v252 = vunpack.c.h.b16 %v96
    %v253 = vunpack.c.l.b16 %v97
    %v254 = vunpack.c.h.b16 %v97
    %v255 = vunpack.c.l.b16 %v98
    %v256 = vunpack.c.h.b16 %v98
    %v257 = vunpack.c.l.b16 %v99
    %v258 = vunpack.c.h.b16 %v99
    %v259 = vunpack.c.l.b16 %v100
    %v260 = vunpack.c.h.b16 %v100
    %v261 = vunpack.c.l.b16 %v101
    %v262 = vunpack.c.h.b16 %v101
    %v263 = vunpack.c.l.b16 %v102
    %v264 = vunpack.c.h.b16 %v102
    %v265 = vunpack.c.l.b16 %v103
    %v266 = vunpack.c.h.b16 %v103
    %v267 = vunpack.c.l.b16 %v104
    %v268 = vunpack.c.h.b16 %v104
    %v269 = vunpack.c.l.b16 %v105
    %v270 = vunpack.c.h.b16 %v105
    %v271 = vunpack.c.l.b16 %v106
    %v272 = vunpack.c.h.b16 %v106
    %v273 = vunpack.c.l.b16 %v107
    %v274 = vunpack.c.h.b16 %v107
    %v275 = vunpack.c.l.b16 %v108
    %v276 = vunpack.c.h.b16 %v108
    %v277 = vunpack.c.l.b16 %v109
    %v278 = vunpack.c.h.b16 %v109
    %v279 = vunpack.c.l.b16 %v110
    %v280 = vunpack.c.h.b16 %v110
    %v281 = vunpack.c.l.b16 %v111
    %v282 = vunpack.c.h.b16 %v111
    %v283 = vunpack.c.l.b16 %v112
    %v284 = vunpack.c.h.b16 %v112
    %v285 = vunpack.c.l.b16 %v113
    %v286 = vunpack.c.h.b16 %v113
    %v287 = vunpack.c.l.b16 %v114
    %v288 = vunpack.c.h.b16 %v114
    %v289 = vunpack.c.l.b16 %v115
    %v290 = vunpack.c.h.b16 %v115
    %v291 = vunpack.c.l.b16 %v116
    %v292 = vunpack.c.h.b16 %v116
    %v293 = vunpack.c.l.b16 %v117
    %v294 = vunpack.c.h.b16 %v117
    %v295 = vunpack.c.l.b16 %v118
    %v296 = vunpack.c.h.b16 %v118
    %v297 = vunpack.c.l.b16 %v119
    %v298 = vunpack.c.h.b16 %v119
    %v299 = vunpack.c.l.b16 %v120
    %v300 = vunpack.c.h.b16 %v120
    %v301 = vunpack.c.l.b16 %v121
    %v302 = vunpack.c.h.b16 %v121
    %v303 = vunpack.c.l.b16 %v122
    %v304 = vunpack.c.h.b16 %v122
    %v305 = vunpack.c.l.b16 %v123
    %v306 = vunpack.c.h.b16 %v123
    %v307 = vunpack.c.l.b16 %v124
    %v308 = vunpack.c.h.b16 %v124
    %v309 = vunpack.c.l.b16 %v125
    %v310 = vunpack.c.h.b16 %v125
    %v311 = vunpack.c.l.b16 %v126
    %v312 = vunpack.c.h.b16 %v126
    %v313 = vunpack.c.l.b16 %v127
    %v314 = vunpack.c.h.b16 %v127
    %v315 = vunpack.c.l.b16 %v128
    %v316 = vunpack.c.h.b16 %v128
    %v317 = vunpack.c.l.b16 %v129
    %v318 = vunpack.c.h.b16 %v129
    %v319 = vunpack.c.l.b16 %v130
    %v320 = vunpack.c.h.b16 %v130
    %v321 = vunpack.c.l.b16 %v131
    %v322 = vunpack.c.h.b16 %v131
    %v323 = vunpack.c.l.b16 %v132
    %v324 = vunpack.c.h.b16 %v132
    %v325 = vpack.c.b16 %v201, %v197
    %v326 = vpack.c.b16 %v202, %v198
    %v327 = vpack.c.b16 %v203, %v199
    %v328 = vpack.c.b16 %v204, %v200
    %v329 = vpack.c.b16 %v209, %v205
    %v330 = vpack.c.b16 %v210, %v206
    %v331 = vpack.c.b16 %v211, %v207
    %v332 = vpack.c.b16 %v212, %v208
    %v333 = vpack.c.b16 %v217, %v213
    %v334 = vpack.c.b16 %v218, %v214
    %v335 = vpack.c.b16 %v219, %v215
    %v336 = vpack.c.b16 %v220, %v216
    %v337 = vpack.c.b16 %v225, %v221
    %v338 = vpack.c.b16 %v226, %v222
    %v339 = vpack.c.b16 %v227, %v223
    %v340 = vpack.c.b16 %v228, %v224
    %v341 = vpack.c.b16 %v233, %v229
    %v342 = vpack.c.b16 %v234, %v230
    %v343 = vpack.c.b16 %v235, %v231
    %v344 = vpack.c.b16 %v236, %v232
    %v345 = vpack.c.b16 %v241, %v237
    %v346 = vpack.c.b16 %v242, %v238
    %v347 = vpack.c.b16 %v243, %v239
    %v348 = vpack.c.b16 %v244, %v240
    %v349 = vpack.c.b16 %v249, %v245
    %v350 = vpack.c.b16 %v250, %v246
    %v351 = vpack.c.b16 %v251, %v247
    %v352 = vpack.c.b16 %v252, %v248
    %v353 = vpack.c.b16 %v257, %v253
    %v354 = vpack.c.b16 %v258, %v254
    %v355 = vpack.c.b16 %v259, %v255
    %v356 = vpack.c.b16 %v260, %v256
    %v357 = vpack.c.b16 %v265, %v261
    %v358 = vpack.c.b16 %v266, %v262
    %v359 = vpack.c.b16 %v267, %v263
    %v360 = vpack.c.b16 %v268, %v264
    %v361 = vpack.c.b16 %v273, %v269
    %v362 = vpack.c.b16 %v274, %v270
    %v363 = vpack.c.b16 %v275, %v271
    %v364 = vpack.c.b16 %v276, %v272
    %v365 = vpack.c.b16 %v281, %v277
    %v366 = vpack.c.b16 %v282, %v278
    %v367 = vpack.c.b16 %v283, %v279
    %v368 = vpack.c.b16 %v284, %v280
    %v369 = vpack.c.b16 %v289, %v285
    %v370 = vpack.c.b16 %v290, %v286
    %v371 = vpack.c.b16 %v291, %v287
    %v372 = vpack.c.b16 %v292, %v288
    %v373 = vpack.c.b16 %v297, %v293
    %v374 = vpack.c.b16 %v298, %v294
    %v375 = vpack.c.b16 %v299, %v295
    %v376 = vpack.c.b16 %v300, %v296
    %v377 = vpack.c.b16 %v305, %v301
    %v378 = vpack.c.b16 %v306, %v302
    %v379 = vpack.c.b16 %v307, %v303
    %v380 = vpack.c.b16 %v308, %v304
    %v381 = vpack.c.b16 %v313, %v309
    %v382 = vpack.c.b16 %v314, %v310
    %v383 = vpack.c.b16 %v315, %v311
    %v384 = vpack.c.b16 %v316, %v312
    %v385 = vpack.c.b16 %v321, %v317
    %v386 = vpack.c.b16 %v322, %v318
    %v387 = vpack.c.b16 %v323, %v319
    %v388 = vpack.c.b16 %v324, %v320
    %453 = vmatpush.bf16.msra.mxu0 %v353
    %454 = vmatpush.bf16.msra.mxu0 %v349
    %455 = vmatpush.bf16.msra.mxu0 %v345
    %456 = vmatpush.bf16.msra.mxu0 %v341
    %457 = vmatpush.bf16.msra.mxu0 %v337
    %458 = vmatpush.bf16.msra.mxu0 %v333
    %459 = vmatpush.bf16.msra.mxu0 %v329
    %460 = vmatpush.bf16.msra.mxu0 %v325
    %461 = vmatmul.bf16.gmra.mxu0 %v67
    %v462 = vpop.f32.mrf.mxu0
    %v463 = vadd.f32 0.0, %v462
    %v464 = vpop.f32.mrf.mxu0
    %465 = vdwg.mxu0
    %466 = vmatpush.bf16.msra.mxu0 %v385
    %467 = vmatpush.bf16.msra.mxu0 %v381
    %468 = vmatpush.bf16.msra.mxu0 %v377
    %469 = vmatpush.bf16.msra.mxu0 %v373
    %470 = vmatpush.bf16.msra.mxu0 %v369
    %471 = vmatpush.bf16.msra.mxu0 %v365
    %472 = vmatpush.bf16.msra.mxu0 %v361
    %473 = vmatpush.bf16.msra.mxu0 %v357
    %474 = vmatmul.bf16.gmra.mxu0 %v68
    %v475 = vpop.f32.mrf.mxu0
    %v476 = vadd.f32 %v463, %v475
    %v477 = vpop.f32.mrf.mxu0
    %478 = vdwg.mxu0
    %479 = vmatpush.bf16.msra.mxu0 %v354
    %480 = vmatpush.bf16.msra.mxu0 %v350
    %481 = vmatpush.bf16.msra.mxu0 %v346
    %482 = vmatpush.bf16.msra.mxu0 %v342
    %483 = vmatpush.bf16.msra.mxu0 %v338
    %484 = vmatpush.bf16.msra.mxu0 %v334
    %485 = vmatpush.bf16.msra.mxu0 %v330
    %486 = vmatpush.bf16.msra.mxu0 %v326
    %487 = vmatmul.bf16.gmra.mxu0 %v67
    %v488 = vpop.f32.mrf.mxu0
    %v489 = vadd.f32 0.0, %v488
    %v490 = vpop.f32.mrf.mxu0
    %491 = vdwg.mxu0
    %492 = vmatpush.bf16.msra.mxu0 %v386
    %493 = vmatpush.bf16.msra.mxu0 %v382
    %494 = vmatpush.bf16.msra.mxu0 %v378
    %495 = vmatpush.bf16.msra.mxu0 %v374
    %496 = vmatpush.bf16.msra.mxu0 %v370
    %497 = vmatpush.bf16.msra.mxu0 %v366
    %498 = vmatpush.bf16.msra.mxu0 %v362
    %499 = vmatpush.bf16.msra.mxu0 %v358
    %500 = vmatmul.bf16.gmra.mxu0 %v68
    %v501 = vpop.f32.mrf.mxu0
    %v502 = vadd.f32 %v489, %v501
    %v503 = vpop.f32.mrf.mxu0
    %504 = vdwg.mxu0
    %505 = vmatpush.bf16.msra.mxu0 %v355
    %506 = vmatpush.bf16.msra.mxu0 %v351
    %507 = vmatpush.bf16.msra.mxu0 %v347
    %508 = vmatpush.bf16.msra.mxu0 %v343
    %509 = vmatpush.bf16.msra.mxu0 %v339
    %510 = vmatpush.bf16.msra.mxu0 %v335
    %511 = vmatpush.bf16.msra.mxu0 %v331
    %512 = vmatpush.bf16.msra.mxu0 %v327
    %513 = vmatmul.bf16.gmra.mxu0 %v67
    %v514 = vpop.f32.mrf.mxu0
    %v515 = vadd.f32 0.0, %v514
    %v516 = vpop.f32.mrf.mxu0
    %517 = vdwg.mxu0
    %518 = vmatpush.bf16.msra.mxu0 %v387
    %519 = vmatpush.bf16.msra.mxu0 %v383
    %520 = vmatpush.bf16.msra.mxu0 %v379
    %521 = vmatpush.bf16.msra.mxu0 %v375
    %522 = vmatpush.bf16.msra.mxu0 %v371
    %523 = vmatpush.bf16.msra.mxu0 %v367
    %524 = vmatpush.bf16.msra.mxu0 %v363
    %525 = vmatpush.bf16.msra.mxu0 %v359
    %526 = vmatmul.bf16.gmra.mxu0 %v68
    %v527 = vpop.f32.mrf.mxu0
    %v528 = vadd.f32 %v515, %v527
    %v529 = vpop.f32.mrf.mxu0
    %530 = vdwg.mxu0
    %531 = vmatpush.bf16.msra.mxu0 %v356
    %532 = vmatpush.bf16.msra.mxu0 %v352
    %533 = vmatpush.bf16.msra.mxu0 %v348
    %534 = vmatpush.bf16.msra.mxu0 %v344
    %535 = vmatpush.bf16.msra.mxu0 %v340
    %536 = vmatpush.bf16.msra.mxu0 %v336
    %537 = vmatpush.bf16.msra.mxu0 %v332
    %538 = vmatpush.bf16.msra.mxu0 %v328
    %539 = vmatmul.bf16.gmra.mxu0 %v67
    %v540 = vpop.f32.mrf.mxu0
    %v541 = vadd.f32 0.0, %v540
    %v542 = vpop.f32.mrf.mxu0
    %543 = vdwg.mxu0
    %544 = vmatpush.bf16.msra.mxu0 %v388
    %545 = vmatpush.bf16.msra.mxu0 %v384
    %546 = vmatpush.bf16.msra.mxu0 %v380
    %547 = vmatpush.bf16.msra.mxu0 %v376
    %548 = vmatpush.bf16.msra.mxu0 %v372
    %549 = vmatpush.bf16.msra.mxu0 %v368
    %550 = vmatpush.bf16.msra.mxu0 %v364
    %551 = vmatpush.bf16.msra.mxu0 %v360
    %552 = vmatmul.bf16.gmra.mxu0 %v68
    %v553 = vpop.f32.mrf.mxu0
    %v554 = vadd.f32 %v541, %v553
    %v555 = vpop.f32.mrf.mxu0
    %556 = vdwg.mxu0
    %v557 = vld [vmem:[%s4] sm:$0x3]
    %v559 = vperm.slane %v557, 0
    %v560 = vperm.slane %v557, 1
    %v563 = vadd.f32 %v476, %v559
    %v564 = vadd.f32 %v502, %v560
    %v565 = vxor.u32 %v563, 2147483648
    %v566 = vxor.u32 %v564, 2147483648
    %v567 = vmul.f32 %v565, 1.442695
    %v568 = vpow.pop %v567
    %v569 = vmul.f32 %v566, 1.442695
    %v570 = vpow.pop %v569
    %v571 = vadd.f32 %v568, 1.0
    %v572 = vadd.f32 %v570, 1.0
    %v573 = vrcp.pop %v571
    %v574 = vmul.f32 %v571, %v573
    %v575 = vsub.f32 1.0, %v574
    %v576 = vmul.f32 %v573, %v575
    %v577 = vadd.f32 %v573, %v576
    %vm578 = vweird.f32 %v571
    %vm579 = vweird.f32 %v573
    %vm580 = vmor %vm578, %vm579
    %v581 = vsel %vm580, %v573, %v577
    %v582 = vand.u32 2147483647, %v571
    %vm583 = vcmp.eq.f32.partialorder %v582, 8.507059e+37
    %v584 = vand.u32 %v571, 2147483648
    %v585 = vor.u32 1.1754944e-38, %v584
    %v586 = vsel %vm583, %v585, %v581
    %v587 = vmul.f32 1.0, %v586
    %v588 = vrcp.pop %v572
    %v589 = vmul.f32 %v572, %v588
    %v590 = vsub.f32 1.0, %v589
    %v591 = vmul.f32 %v588, %v590
    %v592 = vadd.f32 %v588, %v591
    %vm593 = vweird.f32 %v572
    %vm594 = vweird.f32 %v588
    %vm595 = vmor %vm593, %vm594
    %v596 = vsel %vm595, %v588, %v592
    %v597 = vand.u32 2147483647, %v572
    %vm598 = vcmp.eq.f32.partialorder %v597, 8.507059e+37
    %v599 = vand.u32 %v572, 2147483648
    %v600 = vor.u32 1.1754944e-38, %v599
    %v601 = vsel %vm598, %v600, %v596
    %v602 = vmul.f32 1.0, %v601
    %v603 = vld [vmem:[%s5] sm:$0x1]
    %v604 = vadd.f32 %v528, %v603
    %v605 = vld [vmem:[%s6] sm:$0x1]
    %v606 = vadd.f32 %v554, %v605
    %v607 = vmul.f32 %v587, %v606
    %v608 = vadd.f32 %v604, %v607
    %v609 = vtanh.pop %v608
    %v610 = vsub.f32 1.0, %v602
    %v611 = vmul.f32 %v610, %v609
    %v612 = vmul.f32 %v602, %v63
    %v613 = vadd.f32 %v611, %v612
    %614 = vst [vmem:[#allocation2] sm:$0x1] %v613
    %615 = vst [vmem:[#allocation8] sm:$0x1] %v613
    // Predicated region
    $region34: #{tpu_custom_call.1} parent=1 // pred_check
      _
    $region35: #{tpu_custom_call.1} parent=1 // pred_check_branch
      %617 = sbr.rel (0) target = $region37
    $region36: #{tpu_custom_call.1} parent=1 // pred_region
      %619 = vsyncadd [#allocation7], 0
      %s621 = sshll.u32 [#allocation8], 4
      %s622 = int_to_ptr.vmem [resolvable:$true] %s621
      %s623 = sshll.u32 %s7, 4
      %s624 = int_to_ptr.hbm [resolvable:$true] %s623
      %626 = dma.vmem_to_hbm [thread:$0]  %s622, 128, %s624, [#allocation7]
    $region37: #{tpu_custom_call.1} parent=1 // pred_fallthru
      _
    // Predicated region
    $region38: #{tpu_custom_call.1} parent=1 // pred_check
      _
    $region39: #{tpu_custom_call.1} parent=1 // pred_check_branch
      %628 = sbr.rel (0) target = $region41
    $region40: #{tpu_custom_call.1} parent=1 // pred_region
      %630 = dma.done [#allocation7], 128
    $region41: #{tpu_custom_call.1} parent=1 // pred_fallthru
      _
    %631 = vsyncpa [#allocation6], 1
    %632 = vsyncpa [#allocation7], 1

</llo_original>
